<compile_context>
chip_gen: v7x
topology: tpu7x:2x2x1
jax: 0.10.0
libtpu: 0.0.40
codegen_flags: <defaults>
</compile_context>

<pallas_src>
import jax
import jax.numpy as jnp
from jax.experimental import pallas as pl
from jax.experimental.pallas import tpu as pltpu


def _mlp_logsoftmax_kernel(x_ref, w1_ref, b1_ref, w2_ref, b2_ref,
                           w3_ref, b3_ref, o_ref):
    # In-kernel cast: board values {-1,0,1} are exact in bf16.
    x = x_ref[...].astype(jnp.bfloat16)                               # (TB, 9)

    # Linear(9, 128) + ReLU.  bf16 x bf16 MXU matmul, f32 accumulation.
    # (Dropout(0.1) -> identity at inference.)
    h1 = jnp.dot(x, w1_ref[...], preferred_element_type=jnp.float32)
    h1 = jnp.maximum(h1 + b1_ref[...], 0.0)                           # (TB, 128) f32

    # Linear(128, 32) + ReLU.  bf16 operands -> single-pass MXU.
    h2 = jnp.dot(h1.astype(jnp.bfloat16), w2_ref[...],
                 preferred_element_type=jnp.float32)
    h2 = jnp.maximum(h2 + b2_ref[...], 0.0)                           # (TB, 32) f32

    # Linear(32, 3).  bf16 operands -> single-pass MXU.
    z = jnp.dot(h2.astype(jnp.bfloat16), w3_ref[...],
                preferred_element_type=jnp.float32)
    z = z + b3_ref[...]                                               # (TB, 3) f32

    # log_softmax over dim=1 (numerically stable, f32).
    m = jnp.max(z, axis=1, keepdims=True)
    lse = jnp.log(jnp.sum(jnp.exp(z - m), axis=1, keepdims=True)) + m
    o_ref[...] = z - lse


def _round_up(n, m):
    return ((n + m - 1) // m) * m


def check_game_result_forward(x, params, *, block_b=4096):
    """x: (B, 3, 3) board -> (B, 3) float32 log-probabilities."""
    w1, b1, w2, b2, w3, b3 = params
    B = x.shape[0]

    x_flat = x.reshape(B, 9).astype(jnp.float32)   # no separate cast pass

    # Batch tile: multiple of 8, capped at block_b; for large B also capped at
    # ceil(B/2) so the grid has >= 2 parallel steps (v7x megacore utilization).
    half = _round_up((B + 1) // 2, 8)
    TB = max(8, min(block_b, half))
    num_blocks = pl.cdiv(B, TB)
    Bp = num_blocks * TB
    if Bp != B:
        # Padded tail rows are zeros; they produce finite log-probs and are
        # sliced off below (no NaN hazard).
        x_flat = jnp.pad(x_flat, ((0, Bp - B), (0, 0)))

    # Weights/biases: full-array blocks, constant index_map -> resident in VMEM.
    resident = lambda a: pl.BlockSpec(a.shape, lambda i: (0,) * a.ndim)

    weight_bytes = sum(int(p.size) * p.dtype.itemsize for p in params)
    cost = pl.CostEstimate(
        flops=2 * Bp * (9 * 128 + 128 * 32 + 32 * 3),
        transcendentals=4 * Bp,                       # 3x exp + 1x log per row
        bytes_accessed=Bp * 9 * 4 + Bp * 3 * 4 + weight_bytes,
    )

    out = pl.pallas_call(
        _mlp_logsoftmax_kernel,
        out_shape=jax.ShapeDtypeStruct((Bp, 3), jnp.float32),
        grid=(num_blocks,),
        in_specs=[pl.BlockSpec((TB, 9), lambda i: (i, 0)),
                  resident(w1), resident(b1),
                  resident(w2), resident(b2),
                  resident(w3), resident(b3)],
        out_specs=pl.BlockSpec((TB, 3), lambda i: (i, 0)),
        compiler_params=pltpu.CompilerParams(
            dimension_semantics=("parallel",),
            vmem_limit_bytes=32 << 20),
        cost_estimate=cost,
    )(x_flat, w1, b1, w2, b2, w3, b3)

    return out[:B]


def init_params(key):
    """Deterministic init. Weights stored (in, out) in bf16; biases (1, out) f32."""
    k1, k2, k3, k4, k5, k6 = jax.random.split(key, 6)
    scale = lambda fan_in: 1.0 / jnp.sqrt(jnp.float32(fan_in))
    w1 = (jax.random.uniform(k1, (9, 128), jnp.float32, -1, 1) * scale(9)).astype(jnp.bfloat16)
    b1 = jax.random.uniform(k2, (1, 128), jnp.float32, -1, 1) * scale(9)
    w2 = (jax.random.uniform(k3, (128, 32), jnp.float32, -1, 1) * scale(128)).astype(jnp.bfloat16)
    b2 = jax.random.uniform(k4, (1, 32), jnp.float32, -1, 1) * scale(128)
    w3 = (jax.random.uniform(k5, (32, 3), jnp.float32, -1, 1) * scale(32)).astype(jnp.bfloat16)
    b3 = jax.random.uniform(k6, (1, 3), jnp.float32, -1, 1) * scale(32)
    return (w1, b1, w2, b2, w3, b3)


def reference_forward(x, params):
    """Pure-JAX reference using the same dtype policy as the kernel
    (bf16 matmul operands, f32 accumulation / elementwise)."""
    w1, b1, w2, b2, w3, b3 = params
    B = x.shape[0]
    h = x.reshape(B, 9).astype(jnp.bfloat16)
    h = jnp.maximum(jnp.dot(h, w1, preferred_element_type=jnp.float32) + b1, 0.0)
    h = jnp.maximum(jnp.dot(h.astype(jnp.bfloat16), w2,
                            preferred_element_type=jnp.float32) + b2, 0.0)
    z = jnp.dot(h.astype(jnp.bfloat16), w3,
                preferred_element_type=jnp.float32) + b3
    return jax.nn.log_softmax(z, axis=1)


if __name__ == "__main__":
    key = jax.random.PRNGKey(0)
    kp, kx, kx2 = jax.random.split(key, 3)
    params = init_params(kp)

    # Batch of 2 tic-tac-toe boards with values in {-1, 0, 1}.
    x = jax.random.randint(kx, (2, 3, 3), -1, 2).astype(jnp.float32)
    out = jax.block_until_ready(check_game_result_forward(x, params))
    ref = reference_forward(x, params)
    assert out.shape == (2, 3), out.shape
    assert bool(jnp.all(jnp.isfinite(out))), out
    assert jnp.allclose(out, ref, atol=5e-3, rtol=5e-3), (out, ref)

    # Larger batch exercising padding + multi-step batch grid (small tile).
    x2 = jax.random.randint(kx2, (200, 3, 3), -1, 2).astype(jnp.float32)
    out2 = jax.block_until_ready(check_game_result_forward(x2, params, block_b=64))
    ref2 = reference_forward(x2, params)
    assert out2.shape == (200, 3), out2.shape
    assert jnp.allclose(out2, ref2, atol=5e-3, rtol=5e-3)

    print("KERNEL_OK")
</pallas_src>

<mosaic_0001>
module attributes {stable_mosaic.version = 11 : i64} {
  func.func @_mlp_logsoftmax_kernel(%arg0: i32, %arg1: memref<8x9xf32, #tpu.memory_space<vmem>>, %arg2: memref<9x128xbf16, #tpu.memory_space<vmem>>, %arg3: memref<1x128xf32, #tpu.memory_space<vmem>>, %arg4: memref<128x32xbf16, #tpu.memory_space<vmem>>, %arg5: memref<1x32xf32, #tpu.memory_space<vmem>>, %arg6: memref<32x3xbf16, #tpu.memory_space<vmem>>, %arg7: memref<1x3xf32, #tpu.memory_space<vmem>>, %arg8: memref<8x3xf32, #tpu.memory_space<vmem>>) attributes {dimension_semantics = [#tpu.dimension_semantics<parallel>], iteration_bounds = array<i64: 1>, scalar_prefetch = 0 : i64, scratch_operands = 0 : i64, tpu.core_type = #tpu.core_type<tc>, window_params = [{transform_indices = @transform_0, window_bounds = array<i64: 8, 9>}, {pipeline_mode = #tpu.pipeline_mode<synchronous>, transform_indices = @transform_1, window_bounds = array<i64: 9, 128>}, {pipeline_mode = #tpu.pipeline_mode<synchronous>, transform_indices = @transform_2, window_bounds = array<i64: 1, 128>}, {pipeline_mode = #tpu.pipeline_mode<synchronous>, transform_indices = @transform_3, window_bounds = array<i64: 128, 32>}, {pipeline_mode = #tpu.pipeline_mode<synchronous>, transform_indices = @transform_4, window_bounds = array<i64: 1, 32>}, {pipeline_mode = #tpu.pipeline_mode<synchronous>, transform_indices = @transform_5, window_bounds = array<i64: 32, 3>}, {pipeline_mode = #tpu.pipeline_mode<synchronous>, transform_indices = @transform_6, window_bounds = array<i64: 1, 3>}, {transform_indices = @transform_7, window_bounds = array<i64: 8, 3>}]} {
    %c0 = arith.constant 0 : index
    %c0_0 = arith.constant 0 : index
    %0 = vector.load %arg1[%c0, %c0_0] : memref<8x9xf32, #tpu.memory_space<vmem>>, vector<8x9xf32>
    %1 = arith.truncf %0 : vector<8x9xf32> to vector<8x9xbf16>
    %c0_1 = arith.constant 0 : index
    %c0_2 = arith.constant 0 : index
    %2 = vector.load %arg2[%c0_1, %c0_2] : memref<9x128xbf16, #tpu.memory_space<vmem>>, vector<9x128xbf16>
    %cst = arith.constant dense<0.000000e+00> : vector<8x128xf32>
    %3 = tpu.matmul %1, %2, %cst {dimension_numbers = #tpu.dot_dimension_numbers<[1], [0], [0], [1], [0, 0, 1, 1], [], []>} : vector<8x9xbf16>, vector<9x128xbf16>, vector<8x128xf32> -> vector<8x128xf32>
    %c0_3 = arith.constant 0 : index
    %c0_4 = arith.constant 0 : index
    %4 = vector.load %arg3[%c0_3, %c0_4] : memref<1x128xf32, #tpu.memory_space<vmem>>, vector<1x128xf32>
    %5 = vector.broadcast %4 : vector<1x128xf32> to vector<8x128xf32>
    %6 = arith.addf %3, %5 : vector<8x128xf32>
    %cst_5 = arith.constant 0.000000e+00 : f32
    %7 = vector.broadcast %cst_5 : f32 to vector<8x128xf32>
    %8 = arith.maximumf %6, %7 : vector<8x128xf32>
    %9 = arith.truncf %8 : vector<8x128xf32> to vector<8x128xbf16>
    %c0_6 = arith.constant 0 : index
    %c0_7 = arith.constant 0 : index
    %10 = vector.load %arg4[%c0_6, %c0_7] : memref<128x32xbf16, #tpu.memory_space<vmem>>, vector<128x32xbf16>
    %cst_8 = arith.constant dense<0.000000e+00> : vector<8x32xf32>
    %11 = tpu.matmul %9, %10, %cst_8 {dimension_numbers = #tpu.dot_dimension_numbers<[1], [0], [0], [1], [0, 0, 1, 1], [], []>} : vector<8x128xbf16>, vector<128x32xbf16>, vector<8x32xf32> -> vector<8x32xf32>
    %c0_9 = arith.constant 0 : index
    %c0_10 = arith.constant 0 : index
    %12 = vector.load %arg5[%c0_9, %c0_10] : memref<1x32xf32, #tpu.memory_space<vmem>>, vector<1x32xf32>
    %13 = vector.broadcast %12 : vector<1x32xf32> to vector<8x32xf32>
    %14 = arith.addf %11, %13 : vector<8x32xf32>
    %cst_11 = arith.constant 0.000000e+00 : f32
    %15 = vector.broadcast %cst_11 : f32 to vector<8x32xf32>
    %16 = arith.maximumf %14, %15 : vector<8x32xf32>
    %17 = arith.truncf %16 : vector<8x32xf32> to vector<8x32xbf16>
    %c0_12 = arith.constant 0 : index
    %c0_13 = arith.constant 0 : index
    %18 = vector.load %arg6[%c0_12, %c0_13] : memref<32x3xbf16, #tpu.memory_space<vmem>>, vector<32x3xbf16>
    %cst_14 = arith.constant dense<0.000000e+00> : vector<8x3xf32>
    %19 = tpu.matmul %17, %18, %cst_14 {dimension_numbers = #tpu.dot_dimension_numbers<[1], [0], [0], [1], [0, 0, 1, 1], [], []>} : vector<8x32xbf16>, vector<32x3xbf16>, vector<8x3xf32> -> vector<8x3xf32>
    %c0_15 = arith.constant 0 : index
    %c0_16 = arith.constant 0 : index
    %20 = vector.load %arg7[%c0_15, %c0_16] : memref<1x3xf32, #tpu.memory_space<vmem>>, vector<1x3xf32>
    %21 = vector.broadcast %20 : vector<1x3xf32> to vector<8x3xf32>
    %22 = arith.addf %19, %21 : vector<8x3xf32>
    %cst_17 = arith.constant dense<0xFF800000> : vector<8xf32>
    %23 = vector.multi_reduction <maximumf>, %22, %cst_17 [1] : vector<8x3xf32> to vector<8xf32>
    %24 = vector.shape_cast %23 : vector<8xf32> to vector<8x1xf32>
    %25 = vector.broadcast %24 : vector<8x1xf32> to vector<8x3xf32>
    %26 = arith.subf %22, %25 : vector<8x3xf32>
    %27 = math.exp %26 : vector<8x3xf32>
    %cst_18 = arith.constant dense<0.000000e+00> : vector<8xf32>
    %28 = vector.multi_reduction <add>, %27, %cst_18 [1] : vector<8x3xf32> to vector<8xf32>
    %29 = vector.shape_cast %28 : vector<8xf32> to vector<8x1xf32>
    %30 = math.log %29 : vector<8x1xf32>
    %31 = arith.addf %30, %24 : vector<8x1xf32>
    %32 = vector.broadcast %31 : vector<8x1xf32> to vector<8x3xf32>
    %33 = arith.subf %22, %32 : vector<8x3xf32>
    %c0_19 = arith.constant 0 : index
    %c0_20 = arith.constant 0 : index
    %34 = vector.load %arg8[%c0_19, %c0_20] : memref<8x3xf32, #tpu.memory_space<vmem>>, vector<8x3xf32>
    tpu.vector_store %arg8[%c0_19, %c0_20], %33 {strides = array<i32>} : memref<8x3xf32, #tpu.memory_space<vmem>>, vector<8x3xf32>,
    return
  }
  func.func @transform_0(%arg0: i32) -> (i32, i32) {
    %c0_i32 = arith.constant 0 : i32
    %c0_i32_0 = arith.constant 0 : i32
    return %arg0, %c0_i32 : i32, i32
  }
  func.func @transform_1(%arg0: i32) -> (i32, i32) {
    %c0_i32 = arith.constant 0 : i32
    %c0_i32_0 = arith.constant 0 : i32
    %c0_i32_1 = arith.constant 0 : i32
    return %c0_i32, %c0_i32_0 : i32, i32
  }
  func.func @transform_2(%arg0: i32) -> (i32, i32) {
    %c0_i32 = arith.constant 0 : i32
    %c0_i32_0 = arith.constant 0 : i32
    %c0_i32_1 = arith.constant 0 : i32
    return %c0_i32, %c0_i32_0 : i32, i32
  }
  func.func @transform_3(%arg0: i32) -> (i32, i32) {
    %c0_i32 = arith.constant 0 : i32
    %c0_i32_0 = arith.constant 0 : i32
    %c0_i32_1 = arith.constant 0 : i32
    return %c0_i32, %c0_i32_0 : i32, i32
  }
  func.func @transform_4(%arg0: i32) -> (i32, i32) {
    %c0_i32 = arith.constant 0 : i32
    %c0_i32_0 = arith.constant 0 : i32
    %c0_i32_1 = arith.constant 0 : i32
    return %c0_i32, %c0_i32_0 : i32, i32
  }
  func.func @transform_5(%arg0: i32) -> (i32, i32) {
    %c0_i32 = arith.constant 0 : i32
    %c0_i32_0 = arith.constant 0 : i32
    %c0_i32_1 = arith.constant 0 : i32
    return %c0_i32, %c0_i32_0 : i32, i32
  }
  func.func @transform_6(%arg0: i32) -> (i32, i32) {
    %c0_i32 = arith.constant 0 : i32
    %c0_i32_0 = arith.constant 0 : i32
    %c0_i32_1 = arith.constant 0 : i32
    return %c0_i32, %c0_i32_0 : i32, i32
  }
  func.func @transform_7(%arg0: i32) -> (i32, i32) {
    %c0_i32 = arith.constant 0 : i32
    %c0_i32_0 = arith.constant 0 : i32
    return %arg0, %c0_i32 : i32, i32
  }
}

</mosaic_0001>

<llo_original>
// kernel: tpu_custom_call.1
$region0: #{tpu_custom_call.1}
  #allocation0 [shape = 'u32[]', space=smem, size = 0x4, offset = 0x4, fixed_abs, tag = 'smem constant byte address 0x4 - core index']
  #allocation1 [shape = 'u32[144,128]{1,0:T(1,128)}', space=vmem, size = 0x12000, scoped, tag = 'internal scratch']
  %s0 = inlined_call_operand.vmem [shape: f32[8,9], index: 0, kind: input, shape index: {}]
  %s1 = inlined_call_operand.vmem [shape: bf16[9,128], index: 1, kind: input, shape index: {}]
  %s2 = inlined_call_operand.vmem [shape: f32[1,128], index: 2, kind: input, shape index: {}]
  %s3 = inlined_call_operand.vmem [shape: bf16[128,32], index: 3, kind: input, shape index: {}]
  %s4 = inlined_call_operand.vmem [shape: f32[1,32], index: 4, kind: input, shape index: {}]
  %s5 = inlined_call_operand.vmem [shape: bf16[32,3], index: 5, kind: input, shape index: {}]
  %s6 = inlined_call_operand.vmem [shape: f32[1,3], index: 6, kind: input, shape index: {}]
  %s7 = inlined_call_operand.vmem [shape: f32[8,3], index: 7, kind: output, shape index: {}]
  %s8 = sld [smem:[#allocation0]]
  $region38: #{tpu_custom_call.1} parent=0
    _
  %s10 = ssub.s32 1, %s8
  %s11 = scalar_select 0, %s10, %s8
  // Predicated region
  $region2: #{tpu_custom_call.1} parent=0 // pred_check
    _
  $region3: #{tpu_custom_call.1} parent=0 // pred_check_branch
    %13 = sbr.rel (0) target = $region5
  $region4: #{tpu_custom_call.1} parent=0 // pred_region
    _
  $region5: #{tpu_custom_call.1} parent=0 // pred_fallthru
    _
  // Predicated region
  $region6: #{tpu_custom_call.1} parent=0 // pred_check
    _
  $region7: #{tpu_custom_call.1} parent=0 // pred_check_branch
    %15 = sbr.rel (0) target = $region9
  $region8: #{tpu_custom_call.1} parent=0 // pred_region
    _
  $region9: #{tpu_custom_call.1} parent=0 // pred_fallthru
    _
  // Predicated region
  $region10: #{tpu_custom_call.1} parent=0 // pred_check
    _
  $region11: #{tpu_custom_call.1} parent=0 // pred_check_branch
    %17 = sbr.rel (0) target = $region13
  $region12: #{tpu_custom_call.1} parent=0 // pred_region
    _
  $region13: #{tpu_custom_call.1} parent=0 // pred_fallthru
    _
  // Predicated region
  $region14: #{tpu_custom_call.1} parent=0 // pred_check
    _
  $region15: #{tpu_custom_call.1} parent=0 // pred_check_branch
    %19 = sbr.rel (0) target = $region17
  $region16: #{tpu_custom_call.1} parent=0 // pred_region
    _
  $region17: #{tpu_custom_call.1} parent=0 // pred_fallthru
    _
  // Predicated region
  $region18: #{tpu_custom_call.1} parent=0 // pred_check
    _
  $region19: #{tpu_custom_call.1} parent=0 // pred_check_branch
    %21 = sbr.rel (0) target = $region21
  $region20: #{tpu_custom_call.1} parent=0 // pred_region
    _
  $region21: #{tpu_custom_call.1} parent=0 // pred_fallthru
    _
  // Predicated region
  $region22: #{tpu_custom_call.1} parent=0 // pred_check
    _
  $region23: #{tpu_custom_call.1} parent=0 // pred_check_branch
    %23 = sbr.rel (0) target = $region25
  $region24: #{tpu_custom_call.1} parent=0 // pred_region
    _
  $region25: #{tpu_custom_call.1} parent=0 // pred_fallthru
    _
  // Predicated region
  $region26: #{tpu_custom_call.1} parent=0 // pred_check
    _
  $region27: #{tpu_custom_call.1} parent=0 // pred_check_branch
    %25 = sbr.rel (0) target = $region29
  $region28: #{tpu_custom_call.1} parent=0 // pred_region
    _
  $region29: #{tpu_custom_call.1} parent=0 // pred_fallthru
    _
  %v27 = vld [vmem:[%s0] sm:$0xff]
  %v28 = vpack.c.bf16 %v27, %v27
  %v29 = vld [vmem:[%s1] sm:$0xf]
  %v30 = vld [vmem:[%s1 + $0x4] sm:$0x1]
  %v31 = vld [vmem:[%s2] sm:$0x1]
  %v33 = vlaneseq
  %v34 = vshrl.u32 %v33, 7
  %v35 = vsub.s32 0, %v34
  %v36 = vrot.slane %v31, %v35
  %v40 = vunpack.c.l.b16 %v29
  %v41 = vunpack.c.l.b16 %v30
  %v42 = vpack.c.b16 %v41, %v40
  %vm43 = vcmask 72704
  %v45 = vsel %vm43, %v28, 0
  %vm47 = vcmask 1043456
  %vm48 = vcmask 1044480
  %v49 = vsel %vm47, 4294967295, 65535
  %v50 = vsel %vm48, %v49, 0
  %v52 = vand.u32 %v42, %v50
  %54 = vmatprep.subr.bf16.mxu0 0
  %55 = vmatpush1.bf16.msra.mxu0 %v52
  %56 = vmatprep.subr.bf16.mxu0 0
  %57 = vmatpush1.bf16.msra.mxu0 0
  %58 = vmatprep.subr.bf16.mxu0 0
  %59 = vmatpush1.bf16.msra.mxu0 0
  %60 = vmatprep.subr.bf16.mxu0 0
  %61 = vmatpush1.bf16.msra.mxu0 0
  %62 = vmatprep.subr.bf16.mxu0 0
  %63 = vmatpush1.bf16.msra.mxu0 0
  %64 = vmatprep.subr.bf16.mxu0 0
  %65 = vmatpush1.bf16.msra.mxu0 0
  %66 = vmatprep.subr.bf16.mxu0 0
  %67 = vmatpush1.bf16.msra.mxu0 0
  %68 = vmatprep.subr.bf16.mxu0 0
  %69 = vmatpush1.bf16.msra.mxu0 0
  %70 = vmatprep.subr.bf16.mxu0 0
  %71 = vmatpush1.bf16.msra.mxu0 0
  %72 = vmatprep.subr.bf16.mxu0 0
  %73 = vmatpush1.bf16.msra.mxu0 0
  %74 = vmatprep.subr.bf16.mxu0 0
  %75 = vmatpush1.bf16.msra.mxu0 0
  %76 = vmatprep.subr.bf16.mxu0 0
  %77 = vmatpush1.bf16.msra.mxu0 0
  %78 = vmatprep.subr.bf16.mxu0 0
  %79 = vmatpush1.bf16.msra.mxu0 0
  %80 = vmatprep.subr.bf16.mxu0 0
  %81 = vmatpush1.bf16.msra.mxu0 0
  %82 = vmatprep.subr.bf16.mxu0 0
  %83 = vmatpush1.bf16.msra.mxu0 0
  %84 = vmatprep.subr.bf16.mxu0 0
  %85 = vmatpush1.bf16.msra.mxu0 0
  %86 = vmatprep.mubr.bf16.mxu0 0
  %87 = vmatmul.mubr.bf16.gmra.mrb[0].mxu0 %v45
  %v88 = vpop.f32.mrb[0].mxu0
  %v89 = vadd.f32 %v36, %v88
  %v90 = vpop.f32.mrb[0].mxu0
  %v91 = vpop.f32.mrb[0].mxu0
  %v92 = vpop.f32.mrb[0].mxu0
  %93 = vdwg.mxu0
  %v94 = vmax.f32 %v89, 0.0
  %v95 = vpack.c.bf16 %v94, %v94
  %v96 = vld [vmem:[%s3] sm:$0xf]
  %v97 = vld [vmem:[%s3 + $0x4] sm:$0xf]
  %v98 = vld [vmem:[%s3 + $0x8] sm:$0xf]
  %v99 = vld [vmem:[%s3 + $0xc] sm:$0xf]
  %v100 = vld [vmem:[%s3 + $0x10] sm:$0xf]
  %v101 = vld [vmem:[%s3 + $0x14] sm:$0xf]
  %v102 = vld [vmem:[%s3 + $0x18] sm:$0xf]
  %v103 = vld [vmem:[%s3 + $0x1c] sm:$0xf]
  %v104 = vld [vmem:[%s3 + $0x20] sm:$0xf]
  %v105 = vld [vmem:[%s3 + $0x24] sm:$0xf]
  %v106 = vld [vmem:[%s3 + $0x28] sm:$0xf]
  %v107 = vld [vmem:[%s3 + $0x2c] sm:$0xf]
  %v108 = vld [vmem:[%s3 + $0x30] sm:$0xf]
  %v109 = vld [vmem:[%s3 + $0x34] sm:$0xf]
  %v110 = vld [vmem:[%s3 + $0x38] sm:$0xf]
  %v111 = vld [vmem:[%s3 + $0x3c] sm:$0xf]
  %v112 = vld [vmem:[%s4] sm:$0x1]
  %v114 = vlaneseq
  %v115 = vshrl.u32 %v114, 7
  %v116 = vsub.s32 0, %v115
  %v117 = vrot.slane %v112, %v116
  %v135 = vunpack.c.l.b16 %v96
  %v136 = vunpack.c.l.b16 %v97
  %v137 = vunpack.c.l.b16 %v98
  %v138 = vunpack.c.l.b16 %v99
  %v139 = vunpack.c.l.b16 %v100
  %v140 = vunpack.c.l.b16 %v101
  %v141 = vunpack.c.l.b16 %v102
  %v142 = vunpack.c.l.b16 %v103
  %v143 = vunpack.c.l.b16 %v104
  %v144 = vunpack.c.l.b16 %v105
  %v145 = vunpack.c.l.b16 %v106
  %v146 = vunpack.c.l.b16 %v107
  %v147 = vunpack.c.l.b16 %v108
  %v148 = vunpack.c.l.b16 %v109
  %v149 = vunpack.c.l.b16 %v110
  %v150 = vunpack.c.l.b16 %v111
  %v151 = vpack.c.b16 %v136, %v135
  %v152 = vpack.c.b16 %v138, %v137
  %v153 = vpack.c.b16 %v140, %v139
  %v154 = vpack.c.b16 %v142, %v141
  %v155 = vpack.c.b16 %v144, %v143
  %v156 = vpack.c.b16 %v146, %v145
  %v157 = vpack.c.b16 %v148, %v147
  %v158 = vpack.c.b16 %v150, %v149
  %167 = vmatprep.subr.bf16.mxu0 0
  %168 = vmatpush1.bf16.msra.mxu0 %v151
  %169 = vmatprep.subr.bf16.mxu0 0
  %170 = vmatpush1.bf16.msra.mxu0 %v152
  %171 = vmatprep.subr.bf16.mxu0 0
  %172 = vmatpush1.bf16.msra.mxu0 %v153
  %173 = vmatprep.subr.bf16.mxu0 0
  %174 = vmatpush1.bf16.msra.mxu0 %v154
  %175 = vmatprep.subr.bf16.mxu0 0
  %176 = vmatpush1.bf16.msra.mxu0 %v155
  %177 = vmatprep.subr.bf16.mxu0 0
  %178 = vmatpush1.bf16.msra.mxu0 %v156
  %179 = vmatprep.subr.bf16.mxu0 0
  %180 = vmatpush1.bf16.msra.mxu0 %v157
  %181 = vmatprep.subr.bf16.mxu0 0
  %182 = vmatpush1.bf16.msra.mxu0 %v158
  %183 = vmatprep.subr.bf16.mxu0 0
  %184 = vmatpush1.bf16.msra.mxu0 0
  %185 = vmatprep.subr.bf16.mxu0 0
  %186 = vmatpush1.bf16.msra.mxu0 0
  %187 = vmatprep.subr.bf16.mxu0 0
  %188 = vmatpush1.bf16.msra.mxu0 0
  %189 = vmatprep.subr.bf16.mxu0 0
  %190 = vmatpush1.bf16.msra.mxu0 0
  %191 = vmatprep.subr.bf16.mxu0 0
  %192 = vmatpush1.bf16.msra.mxu0 0
  %193 = vmatprep.subr.bf16.mxu0 0
  %194 = vmatpush1.bf16.msra.mxu0 0
  %195 = vmatprep.subr.bf16.mxu0 0
  %196 = vmatpush1.bf16.msra.mxu0 0
  %197 = vmatprep.subr.bf16.mxu0 0
  %198 = vmatpush1.bf16.msra.mxu0 0
  %199 = vmatprep.mubr.bf16.mxu0 0
  %200 = vmatmul.mubr.bf16.gmra.mrb[0].mxu0 %v95
  %v201 = vpop.f32.mrb[0].mxu0
  %v202 = vadd.f32 %v117, %v201
  %v203 = vpop.f32.mrb[0].mxu0
  %v204 = vpop.f32.mrb[0].mxu0
  %v205 = vpop.f32.mrb[0].mxu0
  %206 = vdwg.mxu0
  %v207 = vmax.f32 %v202, 0.0
  %v208 = vpack.c.bf16 %v207, %v207
  %v209 = vld [vmem:[%s5] sm:$0xf]
  %v210 = vld [vmem:[%s5 + $0x4] sm:$0xf]
  %v211 = vld [vmem:[%s5 + $0x8] sm:$0xf]
  %v212 = vld [vmem:[%s5 + $0xc] sm:$0xf]
  %v213 = vld [vmem:[%s6] sm:$0x1]
  %v215 = vlaneseq
  %v216 = vshrl.u32 %v215, 7
  %v217 = vsub.s32 0, %v216
  %v218 = vrot.slane %v213, %v217
  %v224 = vunpack.c.l.b16 %v209
  %v225 = vunpack.c.l.b16 %v210
  %v226 = vunpack.c.l.b16 %v211
  %v227 = vunpack.c.l.b16 %v212
  %v228 = vpack.c.b16 %v225, %v224
  %v229 = vpack.c.b16 %v227, %v226
  %vm232 = vcmask 261120
  %v234 = vsel %vm232, %v208, 0
  %236 = vmatprep.subr.bf16.mxu0 0
  %237 = vmatpush1.bf16.msra.mxu0 %v228
  %238 = vmatprep.subr.bf16.mxu0 0
  %239 = vmatpush1.bf16.msra.mxu0 %v229
  %240 = vmatprep.subr.bf16.mxu0 0
  %241 = vmatpush1.bf16.msra.mxu0 0
  %242 = vmatprep.subr.bf16.mxu0 0
  %243 = vmatpush1.bf16.msra.mxu0 0
  %244 = vmatprep.subr.bf16.mxu0 0
  %245 = vmatpush1.bf16.msra.mxu0 0
  %246 = vmatprep.subr.bf16.mxu0 0
  %247 = vmatpush1.bf16.msra.mxu0 0
  %248 = vmatprep.subr.bf16.mxu0 0
  %249 = vmatpush1.bf16.msra.mxu0 0
  %250 = vmatprep.subr.bf16.mxu0 0
  %251 = vmatpush1.bf16.msra.mxu0 0
  %252 = vmatprep.subr.bf16.mxu0 0
  %253 = vmatpush1.bf16.msra.mxu0 0
  %254 = vmatprep.subr.bf16.mxu0 0
  %255 = vmatpush1.bf16.msra.mxu0 0
  %256 = vmatprep.subr.bf16.mxu0 0
  %257 = vmatpush1.bf16.msra.mxu0 0
  %258 = vmatprep.subr.bf16.mxu0 0
  %259 = vmatpush1.bf16.msra.mxu0 0
  %260 = vmatprep.subr.bf16.mxu0 0
  %261 = vmatpush1.bf16.msra.mxu0 0
  %262 = vmatprep.subr.bf16.mxu0 0
  %263 = vmatpush1.bf16.msra.mxu0 0
  %264 = vmatprep.subr.bf16.mxu0 0
  %265 = vmatpush1.bf16.msra.mxu0 0
  %266 = vmatprep.subr.bf16.mxu0 0
  %267 = vmatpush1.bf16.msra.mxu0 0
  %268 = vmatprep.mubr.bf16.mxu0 0
  %269 = vmatmul.mubr.bf16.gmra.mrb[0].mxu0 %v234
  %v270 = vpop.f32.mrb[0].mxu0
  %v271 = vadd.f32 %v218, %v270
  %v272 = vpop.f32.mrb[0].mxu0
  %v273 = vpop.f32.mrb[0].mxu0
  %v274 = vpop.f32.mrb[0].mxu0
  %275 = vdwg.mxu0
  %vm276 = vcmask 23552
  %v277 = vsel %vm276, %v271, -inf
  %278 = vmax.xlane.f32.xlu0 %v277
  %v279 = vpop.xlane.xlu0 %278
  %v280 = vsub.f32 %v271, %v279
  %v281 = vmul.f32 %v280, 1.442695
  %v282 = vpow.pop %v281
  %v283 = vsel %vm276, %v282, 0.0
  %284 = vadd.xlane.f32.xlu0 %v283
  %v285 = vpop.xlane.xlu0 %284
  %v286 = vlog2.pop %v285
  %v287 = vmul.f32 %v286, 0.6931472
  %v288 = vadd.f32 %v287, %v279
  %v289 = vsub.f32 %v271, %v288
  %290 = vst.msk [vmem:[%s7] sm:$0xff] %vm276, %v289
  // Predicated region
  $region30: #{tpu_custom_call.1} parent=0 // pred_check
    _
  $region31: #{tpu_custom_call.1} parent=0 // pred_check_branch
    %292 = sbr.rel (0) target = $region33
  $region32: #{tpu_custom_call.1} parent=0 // pred_region
    _
  $region33: #{tpu_custom_call.1} parent=0 // pred_fallthru
    _
  // Predicated region
  $region34: #{tpu_custom_call.1} parent=0 // pred_check
    _
  $region35: #{tpu_custom_call.1} parent=0 // pred_check_branch
    %294 = sbr.rel (0) target = $region37
  $region36: #{tpu_custom_call.1} parent=0 // pred_region
    _
  $region37: #{tpu_custom_call.1} parent=0 // pred_fallthru
    _

</llo_original>
